<compile_context>
chip_gen: v7x
topology: tpu7x:2x2x1
jax: 0.10.0
libtpu: 0.0.40
codegen_flags: <defaults>
</compile_context>

<pallas_src>
import jax
import jax.numpy as jnp
from jax.experimental import pallas as pl
from jax.experimental.pallas import tpu as pltpu


def _h_swish_kernel(x_ref, o_ref):
    x = x_ref[...]
    # h_sigmoid(x) = relu6(x + 3) / 6 ; h_swish(x) = x * h_sigmoid(x)
    # Python-float constants keep the computation in the input dtype;
    # dividing by 6.0 (not *1/6) matches the PyTorch formula.
    o_ref[...] = (x * (jnp.clip(x + 3.0, 0.0, 6.0) / 6.0)).astype(o_ref.dtype)


def _h_swish_jnp(x):
    return (x * (jnp.clip(x + 3.0, 0.0, 6.0) / 6.0)).astype(x.dtype)


_LANE_CANDIDATES = (1024, 512, 256, 128)   # wide, lane-dense last dims
_MIN_GRID_STEPS = 8                        # >= 4 pipelined steps per v7x core
_MAX_RAGGED_LANE = 16384                   # cap for the copy-free ragged path


def _block_bytes_for_device():
    """Generation-aware target bytes per block (per array)."""
    try:
        kind = jax.devices()[0].device_kind.lower()
    except Exception:  # pragma: no cover - non-TPU / mock backends
        kind = ""
    if "7x" in kind or "v7" in kind:
        # 3.2 TB/s HBM: a 2 MiB block streams in ~1.3-2.5 us, so the ~0.35 us
        # fixed per-step cost is 15-25%; 6 MiB amortizes it.
        # 2 arrays x 2 buffers x 6 MiB = 24 MiB < 32 MiB scoped / 64 MiB phys.
        return 6 << 20
    if "v6" in kind:
        # 16 MiB total double-buffered footprint, well under the 32 MiB default.
        return 4 << 20
    # v5e (16 MiB scoped-VMEM default) and unknown chips: stay conservative.
    return 2 << 20


def _round_up(v, m):
    return ((v + m - 1) // m) * m


def h_swish(x, *, min_pallas_elems=1 << 20):
    """Elementwise hard-swish: y = x * relu6(x + 3) / 6. Any shape / dtype."""
    n = x.size
    if n == 0:
        return x
    if n < min_pallas_elems or n < 128:
        # Tiny tensors: pallas_call fixed overhead dominates; let XLA fuse it.
        return _h_swish_jnp(x)

    orig_shape = x.shape
    dtype = x.dtype
    itemsize = jnp.dtype(dtype).itemsize
    # Native sublane tile: 8 rows (f32), 16 (bf16), 32 (int8/fp8).
    tile_rows = {4: 8, 2: 16, 1: 32}.get(itemsize, 8)

    if n % 128 == 0:
        # Fast path (common for conv activations): flatten to the widest
        # lane-dense 2D view. Reshape of a contiguous array is free (bitcast).
        lane = next(w for w in _LANE_CANDIDATES if n % w == 0)
        rows = n // lane
    else:
        # Ragged total size: collapse trailing dims into the smallest suffix
        # >= 128 (still a free reshape). Pallas masks the partial lane tile,
        # so there is NO pad/concat on input and NO trailing slice on output.
        lane = 1
        for d in reversed(orig_shape):
            lane *= int(d)
            if lane >= 128:
                break
        if lane < 128 or lane > _MAX_RAGGED_LANE:
            # Pathological shape: XLA's fused elementwise loop is already at
            # the HBM roofline; don't force it through a badly-shaped kernel.
            return _h_swish_jnp(x)
        rows = n // lane

    x2d = x.reshape(rows, lane)
    lane_padded = _round_up(lane, 128)          # VMEM footprint of one lane row

    block_bytes = _block_bytes_for_device()
    target_rows = max(
        tile_rows,
        (block_bytes // (itemsize * lane_padded)) // tile_rows * tile_rows,
    )
    # Keep >= _MIN_GRID_STEPS grid steps so both v7x TensorCores get software-
    # pipelined work on the "parallel" axis, even near the size threshold.
    steps_rows = max(tile_rows,
                     _round_up(pl.cdiv(rows, _MIN_GRID_STEPS), tile_rows))
    block_rows = min(target_rows, steps_rows)
    if block_rows >= rows:
        block_rows = rows                        # single full-extent block

    grid = (pl.cdiv(rows, block_rows),)
    # 2 arrays x 2 pipeline buffers per block, plus slack for internal scratch.
    vmem_limit = 4 * block_bytes + (8 << 20)

    out2d = pl.pallas_call(
        _h_swish_kernel,
        out_shape=jax.ShapeDtypeStruct((rows, lane), dtype),
        grid_spec=pltpu.PrefetchScalarGridSpec(
            num_scalar_prefetch=0,
            grid=grid,
            in_specs=[pl.BlockSpec((block_rows, lane), lambda i: (i, 0))],
            out_specs=pl.BlockSpec((block_rows, lane), lambda i: (i, 0)),
        ),
        compiler_params=pltpu.CompilerParams(
            dimension_semantics=("parallel",),
            vmem_limit_bytes=vmem_limit,
        ),
        cost_estimate=pl.CostEstimate(
            flops=5 * n,
            transcendentals=0,
            bytes_accessed=2 * n * itemsize,
        ),
    )(x2d)

    return out2d.reshape(orig_shape)


if __name__ == "__main__":
    key = jax.random.PRNGKey(0)
    k1, k2, k3, k4 = jax.random.split(key, 4)

    def ref(v):
        return (v * jnp.clip(v + 3.0, 0.0, 6.0) / 6.0).astype(v.dtype)

    # 1) Spec-consistent small NCHW input, forced through the Pallas path.
    x1 = jax.random.normal(k1, (2, 4, 16, 16), dtype=jnp.float32) * 4.0
    y1 = jax.block_until_ready(h_swish(x1, min_pallas_elems=0))
    assert y1.shape == x1.shape and y1.dtype == x1.dtype
    assert jnp.allclose(y1, ref(x1), atol=1e-5, rtol=1e-5)

    # 2) Lane-aligned input exercising the wide-tile, multi-step grid path.
    x2 = jax.random.normal(k2, (2, 16, 32, 32), dtype=jnp.float32) * 4.0
    y2 = jax.block_until_ready(h_swish(x2, min_pallas_elems=0))
    assert jnp.allclose(y2, ref(x2), atol=1e-5, rtol=1e-5)

    # 3) Aligned size with a partial (row-masked) final grid block.
    x3 = jax.random.normal(k3, (2, 10, 32, 32), dtype=jnp.float32) * 4.0
    y3 = jax.block_until_ready(h_swish(x3, min_pallas_elems=0))
    assert jnp.allclose(y3, ref(x3), atol=1e-5, rtol=1e-5)

    # 4) Non-multiple-of-128 total -> copy-free ragged path (masked lanes).
    x4 = jax.random.normal(k4, (3, 5, 7, 11), dtype=jnp.float32) * 4.0
    y4 = jax.block_until_ready(h_swish(x4, min_pallas_elems=0))
    assert y4.shape == x4.shape
    assert jnp.allclose(y4, ref(x4), atol=1e-5, rtol=1e-5)

    # 5) Ragged path with masked lanes AND a partial final row block.
    x5 = jax.random.normal(k1, (42, 200), dtype=jnp.float32) * 4.0
    y5 = jax.block_until_ready(h_swish(x5, min_pallas_elems=0))
    assert jnp.allclose(y5, ref(x5), atol=1e-5, rtol=1e-5)

    # 6) bf16 stays in-dtype (16-row sublane tiles) inside the kernel.
    x6 = x2.astype(jnp.bfloat16)
    y6 = jax.block_until_ready(h_swish(x6, min_pallas_elems=0))
    assert y6.dtype == jnp.bfloat16
    assert jnp.allclose(y6.astype(jnp.float32), ref(x2), atol=0.125, rtol=0.05)

    # 7) Tiny inputs / default threshold fall back to fused XLA elementwise.
    x7 = jax.random.normal(k2, (5, 7), dtype=jnp.float32)
    y7 = jax.block_until_ready(h_swish(x7, min_pallas_elems=0))
    assert jnp.allclose(y7, ref(x7), atol=1e-5, rtol=1e-5)
    y1_fb = jax.block_until_ready(h_swish(x1))
    assert jnp.allclose(y1_fb, ref(x1), atol=1e-5, rtol=1e-5)

    print("KERNEL_OK")
</pallas_src>

<mosaic_0001>
module attributes {stable_mosaic.version = 11 : i64} {
  func.func @_h_swish_kernel(%arg0: i32, %arg1: memref<2x1024xf32, #tpu.memory_space<vmem>>, %arg2: memref<2x1024xf32, #tpu.memory_space<vmem>>) attributes {dimension_semantics = [#tpu.dimension_semantics<parallel>], iteration_bounds = array<i64: 1>, scalar_prefetch = 0 : i64, scratch_operands = 0 : i64, tpu.core_type = #tpu.core_type<tc>, window_params = [{transform_indices = @transform_0, window_bounds = array<i64: 2, 1024>}, {transform_indices = @transform_1, window_bounds = array<i64: 2, 1024>}]} {
    %c0 = arith.constant 0 : index
    %c0_0 = arith.constant 0 : index
    %0 = vector.load %arg1[%c0, %c0_0] : memref<2x1024xf32, #tpu.memory_space<vmem>>, vector<2x1024xf32>
    %cst = arith.constant 3.000000e+00 : f32
    %1 = vector.broadcast %cst : f32 to vector<2x1024xf32>
    %2 = arith.addf %0, %1 : vector<2x1024xf32>
    %cst_1 = arith.constant 0.000000e+00 : f32
    %cst_2 = arith.constant 6.000000e+00 : f32
    %3 = vector.broadcast %cst_1 : f32 to vector<2x1024xf32>
    %4 = arith.maximumf %3, %2 : vector<2x1024xf32>
    %5 = vector.broadcast %cst_2 : f32 to vector<2x1024xf32>
    %6 = arith.minimumf %5, %4 : vector<2x1024xf32>
    %cst_3 = arith.constant 6.000000e+00 : f32
    %7 = vector.broadcast %cst_3 : f32 to vector<2x1024xf32>
    %8 = arith.divf %6, %7 : vector<2x1024xf32>
    %9 = arith.mulf %0, %8 : vector<2x1024xf32>
    %c0_4 = arith.constant 0 : index
    %c0_5 = arith.constant 0 : index
    %10 = vector.load %arg2[%c0_4, %c0_5] : memref<2x1024xf32, #tpu.memory_space<vmem>>, vector<2x1024xf32>
    tpu.vector_store %arg2[%c0_4, %c0_5], %9 {strides = array<i32>} : memref<2x1024xf32, #tpu.memory_space<vmem>>, vector<2x1024xf32>,
    return
  }
  func.func @transform_0(%arg0: i32) -> (i32, i32) {
    %c0_i32 = arith.constant 0 : i32
    %c0_i32_0 = arith.constant 0 : i32
    return %arg0, %c0_i32 : i32, i32
  }
  func.func @transform_1(%arg0: i32) -> (i32, i32) {
    %c0_i32 = arith.constant 0 : i32
    %c0_i32_0 = arith.constant 0 : i32
    return %arg0, %c0_i32 : i32, i32
  }
}

</mosaic_0001>

<llo_original>
// kernel: tpu_custom_call.1
$region0: #{tpu_custom_call.1}
  #allocation0 [shape = 'u32[]', space=smem, size = 0x4, offset = 0x4, fixed_abs, tag = 'smem constant byte address 0x4 - core index']
  #allocation1 [shape = 'u32[144,128]{1,0:T(1,128)}', space=vmem, size = 0x12000, scoped, tag = 'internal scratch']
  %s0 = inlined_call_operand.hbm [shape: f32[2,1024], index: 0, kind: input, shape index: {}]
  %s1 = inlined_call_operand.hbm [shape: f32[2,1024], index: 1, kind: output, shape index: {}]
  %s2 = sld [smem:[#allocation0]]
  $region18: #{tpu_custom_call.1} parent=0
    _
  %s4 = ssub.s32 1, %s2
  %s5 = scalar_select 0, %s4, %s2
  $region1: #{tpu_custom_call.1} parent=0
    #allocation2 [shape = 'u8[8192]{0}', space=vmem, size = 0x2000, scoped, tag = 'input window, operand 0, single buffered']
    #allocation3 [shape = 's32[1]{0}', space=sflag, size = 0x4, scoped, tag = 'scoped memory for tpu_custom_call.1']
    #allocation4 [shape = 's32[1]{0}', space=sflag, size = 0x4, scoped, tag = 'scoped memory for tpu_custom_call.1']
    #allocation5 [shape = 'u8[8192]{0}', space=vmem, size = 0x2000, scoped, tag = 'output window, operand 0, single buffered']
    %6 = vsyncpa [#allocation3], 0
    %7 = vsyncpa [#allocation4], 0
    // Predicated region
    $region2: #{tpu_custom_call.1} parent=1 // pred_check
      _
    $region3: #{tpu_custom_call.1} parent=1 // pred_check_branch
      %9 = sbr.rel (0) target = $region5
    $region4: #{tpu_custom_call.1} parent=1 // pred_region
      %s11 = ssub.s32 256, 256
      %12 = vsyncadd [#allocation3], %s11
      %s14 = sshll.u32 [#allocation2], 4
      %s15 = int_to_ptr.vmem [resolvable:$true] %s14
      %17 = dma.hbm_to_vmem [thread:$0]  %s0, 256, %s15, [#allocation3]
    $region5: #{tpu_custom_call.1} parent=1 // pred_fallthru
      _
    // Predicated region
    $region6: #{tpu_custom_call.1} parent=1 // pred_check
      _
    $region7: #{tpu_custom_call.1} parent=1 // pred_check_branch
      %19 = sbr.rel (0) target = $region9
    $region8: #{tpu_custom_call.1} parent=1 // pred_region
      %20 = dma.done [#allocation3], 256
    $region9: #{tpu_custom_call.1} parent=1 // pred_fallthru
      _
    %v21 = vld [vmem:[#allocation2] sm:$0xff]
    %v22 = vld [vmem:[#allocation2 + $0x8] sm:$0xff]
    %v23 = vadd.f32 %v21, 3.0
    %v24 = vadd.f32 %v22, 3.0
    %v25 = vmax.f32 %v23, 0.0
    %v26 = vmax.f32 %v24, 0.0
    %v27 = vmin.f32 %v25, 6.0
    %v28 = vmin.f32 %v26, 6.0
    %v29 = vrcp.pop 6.0
    %v30 = vmul.f32 %v27, %v29
    %v31 = vmul.f32 %v28, %v29
    %v32 = vmul.f32 %v21, %v30
    %v33 = vmul.f32 %v22, %v31
    %34 = vst [vmem:[#allocation5] sm:$0xff] %v32
    %35 = vst [vmem:[#allocation5 + $0x8] sm:$0xff] %v33
    // Predicated region
    $region10: #{tpu_custom_call.1} parent=1 // pred_check
      _
    $region11: #{tpu_custom_call.1} parent=1 // pred_check_branch
      %37 = sbr.rel (0) target = $region13
    $region12: #{tpu_custom_call.1} parent=1 // pred_region
      %s39 = ssub.s32 256, 256
      %40 = vsyncadd [#allocation4], %s39
      %s42 = sshll.u32 [#allocation5], 4
      %s43 = int_to_ptr.vmem [resolvable:$true] %s42
      %45 = dma.vmem_to_hbm [thread:$0]  %s43, 256, %s1, [#allocation4]
    $region13: #{tpu_custom_call.1} parent=1 // pred_fallthru
      _
    // Predicated region
    $region14: #{tpu_custom_call.1} parent=1 // pred_check
      _
    $region15: #{tpu_custom_call.1} parent=1 // pred_check_branch
      %47 = sbr.rel (0) target = $region17
    $region16: #{tpu_custom_call.1} parent=1 // pred_region
      %48 = dma.done [#allocation4], 256
    $region17: #{tpu_custom_call.1} parent=1 // pred_fallthru
      _
    %49 = vsyncpa [#allocation3], 1
    %50 = vsyncpa [#allocation4], 1

</llo_original>
